<compile_context>
chip_gen: v7x
topology: tpu7x:2x2x1
jax: 0.10.0
libtpu: 0.0.40
codegen_flags: <defaults>
</compile_context>

<pallas_src>
import math
import functools

import jax
import jax.numpy as jnp
from jax.experimental import pallas as pl
from jax.experimental.pallas import tpu as pltpu


# ----------------------------------------------------------------------------
# Parameter setup (glue): sinusoidal table, matches the PyTorch __init__ exactly.
# pe has shape (max_len, 1, d_model).
# ----------------------------------------------------------------------------
def make_positional_encoding_table(d_model: int, max_len: int = 5000) -> jnp.ndarray:
    position = jnp.arange(0, max_len, dtype=jnp.float32)[:, None]            # (max_len, 1)
    div_term = jnp.exp(
        jnp.arange(0, d_model, 2, dtype=jnp.float32) * (-math.log(10000.0) / d_model)
    )                                                                         # (d_model//2,)
    angles = position * div_term                                              # (max_len, d_model//2)
    pe = jnp.zeros((max_len, d_model), dtype=jnp.float32)
    pe = pe.at[:, 0::2].set(jnp.sin(angles))
    pe = pe.at[:, 1::2].set(jnp.cos(angles))
    return pe[:, None, :]                                                     # (max_len, 1, d_model)


# ----------------------------------------------------------------------------
# Pallas kernels (operate on the flattened (S, B*D) view; pe block is (tile_s, D)).
# ----------------------------------------------------------------------------
def _pe_add_kernel(x_ref, pe_ref, o_ref, *, batch):
    pe = pe_ref[...]
    if batch > 1:
        pe = jnp.tile(pe, (1, batch))          # broadcast over batch, in-register
    o_ref[...] = (x_ref[...] + pe).astype(o_ref.dtype)


def _pe_add_dropout_kernel(x_ref, pe_ref, bits_ref, o_ref, *,
                           batch, keep_threshold, scale):
    pe = pe_ref[...]
    if batch > 1:
        pe = jnp.tile(pe, (1, batch))
    y = x_ref[...] + pe
    # Unsigned integer-threshold compare: P(bits >= thr) = 1 - p  (no float convert,
    # no signed-shift pitfall).
    keep = bits_ref[...] >= jnp.uint32(keep_threshold)
    o_ref[...] = jnp.where(keep, y * scale, jnp.zeros_like(y)).astype(o_ref.dtype)


# ----------------------------------------------------------------------------
# Tile sizing: budget the double-buffered pipeline well under the scoped VMEM
# limit (conservative across v5e / v6e / v7x).
# ----------------------------------------------------------------------------
def _choose_tile_s(S, B, D, itemsize, with_bits, budget_bytes=20 * 1024 * 1024):
    row_io = 2 * B * D * itemsize              # x tile in + out tile
    row_pe = D * itemsize
    row_bits = B * D * 4 if with_bits else 0
    per_row = 2 * (row_io + row_pe + row_bits)  # x2 for double-buffering
    tile = max(1, budget_bytes // max(per_row, 1))
    if tile >= S:
        return S
    return int(max(8, (tile // 8) * 8))


# ----------------------------------------------------------------------------
# Wrapper: forward pass of the PositionalEncoding module.
# ----------------------------------------------------------------------------
def positional_encoding_forward(x, pe_table, *, dropout_p=0.1, training=False,
                                rng_key=None, tile_s=None):
    """x: (S, B, D).  Returns (S, B, D) with the same dtype as x."""
    S, B, D = x.shape
    dtype = x.dtype
    itemsize = jnp.dtype(dtype).itemsize

    pe2 = pe_table[:S, 0, :].astype(dtype)      # (S, D), cast to activation dtype
    x2 = x.reshape(S, B * D)                    # contiguous reshape: free

    use_dropout = bool(training) and float(dropout_p) > 0.0

    if tile_s is None:
        tile_s = _choose_tile_s(S, B, D, itemsize, use_dropout)
    tile_s = int(tile_s)
    if tile_s >= S:
        tile_s = S
    else:
        tile_s = min(max(8, (tile_s // 8) * 8), S)

    grid = (pl.cdiv(S, tile_s),)

    x_spec = pl.BlockSpec((tile_s, B * D), lambda i: (i, 0))
    pe_spec = pl.BlockSpec((tile_s, D), lambda i: (i, 0))
    out_spec = pl.BlockSpec((tile_s, B * D), lambda i: (i, 0))
    out_shape = jax.ShapeDtypeStruct((S, B * D), dtype)

    compiler_params = pltpu.CompilerParams(
        dimension_semantics=("parallel",),        # independent per S tile; v7x megacore
        vmem_limit_bytes=32 * 1024 * 1024,        # safe on v5e/v6e/v7x
    )

    if not use_dropout:
        out2 = pl.pallas_call(
            functools.partial(_pe_add_kernel, batch=B),
            out_shape=out_shape,
            grid=grid,
            in_specs=[x_spec, pe_spec],
            out_specs=out_spec,
            compiler_params=compiler_params,
        )(x2, pe2)
        return out2.reshape(S, B, D)

    # Training path: inverted dropout on (x + pe).
    # TODO(synk): on-chip pltpu.prng_random_bits would avoid streaming these bits from
    # HBM, but it is not available in interpret mode and PyTorch's dropout RNG stream
    # cannot be reproduced bit-exactly anyway; bits are generated with jax.random.
    if rng_key is None:
        rng_key = jax.random.PRNGKey(0)
    bits = jax.random.bits(rng_key, (S, B * D), dtype=jnp.uint32)

    p = float(dropout_p)
    keep_threshold = min(int(round(p * 2.0 ** 32)), 2 ** 32 - 1)
    scale = 1.0 / (1.0 - p)
    bits_spec = pl.BlockSpec((tile_s, B * D), lambda i: (i, 0))

    out2 = pl.pallas_call(
        functools.partial(_pe_add_dropout_kernel, batch=B,
                          keep_threshold=keep_threshold, scale=scale),
        out_shape=out_shape,
        grid=grid,
        in_specs=[x_spec, pe_spec, bits_spec],
        out_specs=out_spec,
        compiler_params=compiler_params,
    )(x2, pe2, bits)
    return out2.reshape(S, B, D)


# ----------------------------------------------------------------------------
# Demo / correctness checks
# ----------------------------------------------------------------------------
if __name__ == "__main__":
    key = jax.random.PRNGKey(0)

    # Small shapes consistent with the module's (seq_len, batch, d_model) layout.
    S, B, D = 8, 2, 32
    max_len = 64

    x = jax.random.normal(key, (S, B, D), dtype=jnp.float32)
    pe_table = make_positional_encoding_table(D, max_len)

    # --- eval path (dropout is identity): x + pe[:S] ---
    out = positional_encoding_forward(x, pe_table, dropout_p=0.1, training=False)
    out = jax.block_until_ready(out)
    ref = x + pe_table[:S]
    assert out.shape == (S, B, D)
    assert jnp.allclose(out, ref, atol=1e-6, rtol=1e-6)

    # --- multi-tile eval path: grid > 1 plus a partial final S tile ---
    S2, B2, D2 = 20, 4, 128
    x_big = jax.random.normal(jax.random.PRNGKey(1), (S2, B2, D2), dtype=jnp.float32)
    pe_table_big = make_positional_encoding_table(D2, 64)
    out_big = positional_encoding_forward(x_big, pe_table_big, training=False, tile_s=8)
    out_big = jax.block_until_ready(out_big)
    ref_big = x_big + pe_table_big[:S2]
    assert jnp.allclose(out_big, ref_big, atol=1e-6, rtol=1e-6)

    # --- training path: every output element is either 0 or (x + pe) / (1 - p) ---
    p = 0.25
    out_tr = positional_encoding_forward(
        x, pe_table, dropout_p=p, training=True, rng_key=jax.random.PRNGKey(2))
    out_tr = jax.block_until_ready(out_tr)
    scaled = ref / (1.0 - p)
    ok = jnp.isclose(out_tr, 0.0, atol=1e-6) | jnp.isclose(out_tr, scaled,
                                                           atol=1e-5, rtol=1e-5)
    assert out_tr.shape == (S, B, D)
    assert bool(jnp.all(ok))

    print("KERNEL_OK")
</pallas_src>

<mosaic_0001>
module attributes {stable_mosaic.version = 11 : i64} {
  func.func @_pe_add_kernel(%arg0: i32, %arg1: memref<8x64xf32, #tpu.memory_space<vmem>>, %arg2: memref<8x32xf32, #tpu.memory_space<vmem>>, %arg3: memref<8x64xf32, #tpu.memory_space<vmem>>) attributes {dimension_semantics = [#tpu.dimension_semantics<parallel>], iteration_bounds = array<i64: 1>, scalar_prefetch = 0 : i64, scratch_operands = 0 : i64, tpu.core_type = #tpu.core_type<tc>, window_params = [{transform_indices = @transform_0, window_bounds = array<i64: 8, 64>}, {transform_indices = @transform_1, window_bounds = array<i64: 8, 32>}, {transform_indices = @transform_2, window_bounds = array<i64: 8, 64>}]} {
    %c0 = arith.constant 0 : index
    %c0_0 = arith.constant 0 : index
    %0 = vector.load %arg2[%c0, %c0_0] : memref<8x32xf32, #tpu.memory_space<vmem>>, vector<8x32xf32>
    %1 = tpu.concatenate %0, %0 in 1 : vector<8x32xf32>, vector<8x32xf32> -> vector<8x64xf32>
    %c0_1 = arith.constant 0 : index
    %c0_2 = arith.constant 0 : index
    %2 = vector.load %arg1[%c0_1, %c0_2] : memref<8x64xf32, #tpu.memory_space<vmem>>, vector<8x64xf32>
    %3 = arith.addf %2, %1 : vector<8x64xf32>
    %c0_3 = arith.constant 0 : index
    %c0_4 = arith.constant 0 : index
    %4 = vector.load %arg3[%c0_3, %c0_4] : memref<8x64xf32, #tpu.memory_space<vmem>>, vector<8x64xf32>
    tpu.vector_store %arg3[%c0_3, %c0_4], %3 {strides = array<i32>} : memref<8x64xf32, #tpu.memory_space<vmem>>, vector<8x64xf32>,
    return
  }
  func.func @transform_0(%arg0: i32) -> (i32, i32) {
    %c0_i32 = arith.constant 0 : i32
    %c0_i32_0 = arith.constant 0 : i32
    return %arg0, %c0_i32 : i32, i32
  }
  func.func @transform_1(%arg0: i32) -> (i32, i32) {
    %c0_i32 = arith.constant 0 : i32
    %c0_i32_0 = arith.constant 0 : i32
    return %arg0, %c0_i32 : i32, i32
  }
  func.func @transform_2(%arg0: i32) -> (i32, i32) {
    %c0_i32 = arith.constant 0 : i32
    %c0_i32_0 = arith.constant 0 : i32
    return %arg0, %c0_i32 : i32, i32
  }
}

</mosaic_0001>

<llo_original>
// kernel: tpu_custom_call.1
$region0: #{tpu_custom_call.1}
  #allocation0 [shape = 'u32[]', space=smem, size = 0x4, offset = 0x4, fixed_abs, tag = 'smem constant byte address 0x4 - core index']
  #allocation1 [shape = 'u32[144,128]{1,0:T(1,128)}', space=vmem, size = 0x12000, scoped, tag = 'internal scratch']
  %s0 = inlined_call_operand.hbm [shape: f32[8,64], index: 0, kind: input, shape index: {}]
  %s1 = inlined_call_operand.hbm [shape: f32[8,32], index: 1, kind: input, shape index: {}]
  %s2 = inlined_call_operand.hbm [shape: f32[8,64], index: 2, kind: output, shape index: {}]
  %s3 = sld [smem:[#allocation0]]
  $region26: #{tpu_custom_call.1} parent=0
    _
  %s5 = ssub.s32 1, %s3
  %s6 = scalar_select 0, %s5, %s3
  $region1: #{tpu_custom_call.1} parent=0
    #allocation2 [shape = 'u8[4096]{0}', space=vmem, size = 0x1000, scoped, tag = 'input window, operand 0, single buffered']
    #allocation3 [shape = 's32[1]{0}', space=sflag, size = 0x4, scoped, tag = 'scoped memory for tpu_custom_call.1']
    #allocation4 [shape = 's32[1]{0}', space=sflag, size = 0x4, scoped, tag = 'scoped memory for tpu_custom_call.1']
    #allocation5 [shape = 'u8[4096]{0}', space=vmem, size = 0x1000, scoped, tag = 'input window, operand 1, single buffered']
    #allocation6 [shape = 's32[1]{0}', space=sflag, size = 0x4, scoped, tag = 'scoped memory for tpu_custom_call.1']
    #allocation7 [shape = 'u8[4096]{0}', space=vmem, size = 0x1000, scoped, tag = 'output window, operand 0, single buffered']
    %7 = vsyncpa [#allocation3], 0
    %8 = vsyncpa [#allocation6], 0
    %9 = vsyncpa [#allocation4], 0
    // Predicated region
    $region2: #{tpu_custom_call.1} parent=1 // pred_check
      _
    $region3: #{tpu_custom_call.1} parent=1 // pred_check_branch
      %11 = sbr.rel (0) target = $region5
    $region4: #{tpu_custom_call.1} parent=1 // pred_region
      %s13 = ssub.s32 128, 128
      %14 = vsyncadd [#allocation3], %s13
      %s16 = sshll.u32 [#allocation2], 4
      %s17 = int_to_ptr.vmem [resolvable:$true] %s16
      %19 = dma.hbm_to_vmem [thread:$0]  %s0, 128, %s17, [#allocation3]
    $region5: #{tpu_custom_call.1} parent=1 // pred_fallthru
      _
    // Predicated region
    $region6: #{tpu_custom_call.1} parent=1 // pred_check
      _
    $region7: #{tpu_custom_call.1} parent=1 // pred_check_branch
      %21 = sbr.rel (0) target = $region9
    $region8: #{tpu_custom_call.1} parent=1 // pred_region
      %s23 = ssub.s32 128, 128
      %24 = vsyncadd [#allocation6], %s23
      %s26 = sshll.u32 [#allocation5], 4
      %s27 = int_to_ptr.vmem [resolvable:$true] %s26
      %29 = dma.hbm_to_vmem [thread:$0]  %s1, 128, %s27, [#allocation6]
    $region9: #{tpu_custom_call.1} parent=1 // pred_fallthru
      _
    // Predicated region
    $region10: #{tpu_custom_call.1} parent=1 // pred_check
      _
    $region11: #{tpu_custom_call.1} parent=1 // pred_check_branch
      %31 = sbr.rel (0) target = $region13
    $region12: #{tpu_custom_call.1} parent=1 // pred_region
      %32 = dma.done [#allocation3], 128
    $region13: #{tpu_custom_call.1} parent=1 // pred_fallthru
      _
    // Predicated region
    $region14: #{tpu_custom_call.1} parent=1 // pred_check
      _
    $region15: #{tpu_custom_call.1} parent=1 // pred_check_branch
      %34 = sbr.rel (0) target = $region17
    $region16: #{tpu_custom_call.1} parent=1 // pred_region
      %35 = dma.done [#allocation6], 128
    $region17: #{tpu_custom_call.1} parent=1 // pred_fallthru
      _
    %v36 = vld [vmem:[#allocation5] sm:$0xff]
    %38 = vrot.lane.b32.xlu0 %v36, 32
    %v39 = vpop.permute.xlu0 %38
    %vm41 = vcmask 261120
    %v42 = vsel %vm41, %v36, %v39
    %v43 = vld [vmem:[#allocation2] sm:$0xff]
    %v44 = vadd.f32 %v43, %v42
    %vm45 = vcmask 523264
    %46 = vst.msk [vmem:[#allocation7] sm:$0xff] %vm45, %v44
    // Predicated region
    $region18: #{tpu_custom_call.1} parent=1 // pred_check
      _
    $region19: #{tpu_custom_call.1} parent=1 // pred_check_branch
      %48 = sbr.rel (0) target = $region21
    $region20: #{tpu_custom_call.1} parent=1 // pred_region
      %s50 = ssub.s32 128, 128
      %51 = vsyncadd [#allocation4], %s50
      %s53 = sshll.u32 [#allocation7], 4
      %s54 = int_to_ptr.vmem [resolvable:$true] %s53
      %56 = dma.vmem_to_hbm [thread:$0]  %s54, 128, %s2, [#allocation4]
    $region21: #{tpu_custom_call.1} parent=1 // pred_fallthru
      _
    // Predicated region
    $region22: #{tpu_custom_call.1} parent=1 // pred_check
      _
    $region23: #{tpu_custom_call.1} parent=1 // pred_check_branch
      %58 = sbr.rel (0) target = $region25
    $region24: #{tpu_custom_call.1} parent=1 // pred_region
      %59 = dma.done [#allocation4], 128
    $region25: #{tpu_custom_call.1} parent=1 // pred_fallthru
      _
    %60 = vsyncpa [#allocation3], 1
    %61 = vsyncpa [#allocation6], 1
    %62 = vsyncpa [#allocation4], 1

</llo_original>
